<compile_context>
chip_gen: v5e
topology: v5e:2x2
jax: 0.10.0
libtpu: 0.0.40
codegen_flags: <defaults>
</compile_context>

<pallas_src>
import functools

import jax
import jax.numpy as jnp
from jax.experimental import pallas as pl
from jax.experimental.pallas import tpu as pltpu


def tictactoe_mlp_kernel(x_ref, w1_ref, b1_ref, w2_ref, b2_ref, o_ref):
    """Fused Linear(9,64) -> ReLU -> Linear(64,9) on one (TB, 9) batch tile."""
    x = x_ref[...]                                                 # (TB, 9)
    # Hidden layer: (TB, 9) @ (9, 64), f32 accumulate on the MXU, + (1, 64) bias.
    h = jnp.dot(x, w1_ref[...], preferred_element_type=jnp.float32) + b1_ref[...]
    h = jnp.maximum(h, 0.0)                                        # ReLU on the VPU (f32)
    # Output layer: (TB, 64) @ (64, 9), f32 accumulate, + (1, 9) bias.
    h = h.astype(w2_ref.dtype)                                     # keep bf16 MXU path if requested
    out = jnp.dot(h, w2_ref[...], preferred_element_type=jnp.float32) + b2_ref[...]
    o_ref[...] = out.astype(o_ref.dtype)


def tictactoe_forward(x, w1, b1, w2, b2, *, block_b=4096, storage_dtype=None):
    """Batch-tiled forward pass.

    x : (B, 9) f32.  Weights already transposed: w1 (9, 64), w2 (64, 9);
    biases as (1, 64) / (1, 9).  Returns (B, 9) f32.

    block_b       : batch tile size (rows per grid step).  Bigger tiles
                    amortize the ~0.35 us/step pipeline overhead; 4096 rows
                    keeps the double-buffered x/out tiles well under the
                    default scoped-VMEM limit on all of v5e/v6e/v7x.
    storage_dtype : dtype used to stream x / w1 / w2 (e.g. jnp.bfloat16).
                    Accumulation, bias-add and ReLU stay f32.
    """
    B = x.shape[0]
    store_dt = storage_dtype if storage_dtype is not None else x.dtype

    # Tile size: multiple of 8 sublanes, no bigger than needed for small B.
    tb = min(int(block_b), ((B + 7) // 8) * 8)
    tb = max(8, ((tb + 7) // 8) * 8)

    # Pad B up to a multiple of the tile so every block is full-sized.
    b_pad = pl.cdiv(B, tb) * tb
    x_p = jnp.pad(x, ((0, b_pad - B), (0, 0))) if b_pad != B else x

    x_p = x_p.astype(store_dt)
    w1c = w1.astype(store_dt)
    w2c = w2.astype(store_dt)
    b1c = b1.astype(jnp.float32)
    b2c = b2.astype(jnp.float32)

    itemsize = jnp.dtype(store_dt).itemsize
    cost = pl.CostEstimate(
        flops=2 * b_pad * (9 * 64 + 64 * 9),
        transcendentals=0,
        bytes_accessed=(b_pad * 9 * itemsize          # x streamed in
                        + b_pad * 9 * 4               # out streamed back (f32)
                        + (9 * 64 + 64 * 9) * itemsize
                        + (64 + 9) * 4),              # weights/biases (once)
    )

    out = pl.pallas_call(
        tictactoe_mlp_kernel,
        out_shape=jax.ShapeDtypeStruct((b_pad, 9), jnp.float32),
        grid_spec=pl.GridSpec(
            grid=(b_pad // tb,),
            in_specs=[
                pl.BlockSpec((tb, 9), lambda i: (i, 0)),   # x   tile, streamed per step
                pl.BlockSpec((9, 64), lambda i: (0, 0)),   # w1  VMEM-resident
                pl.BlockSpec((1, 64), lambda i: (0, 0)),   # b1  VMEM-resident
                pl.BlockSpec((64, 9), lambda i: (0, 0)),   # w2  VMEM-resident
                pl.BlockSpec((1, 9), lambda i: (0, 0)),    # b2  VMEM-resident
            ],
            out_specs=pl.BlockSpec((tb, 9), lambda i: (i, 0)),
        ),
        compiler_params=pltpu.CompilerParams(
            # Batch tiles are independent -> shard across both TCs on v7x.
            dimension_semantics=("parallel",)),
        cost_estimate=cost,
    )(x_p, w1c, b1c, w2c, b2c)

    return out[:B]


def init_params(key):
    """Deterministic init matching PyTorch Linear's U(-1/sqrt(fan_in), 1/sqrt(fan_in))."""
    k1, k2, k3, k4 = jax.random.split(key, 4)
    bound1 = 1.0 / jnp.sqrt(9.0)
    bound2 = 1.0 / jnp.sqrt(64.0)
    w1 = jax.random.uniform(k1, (9, 64), jnp.float32, -bound1, bound1)   # (in, out)
    b1 = jax.random.uniform(k2, (1, 64), jnp.float32, -bound1, bound1)
    w2 = jax.random.uniform(k3, (64, 9), jnp.float32, -bound2, bound2)
    b2 = jax.random.uniform(k4, (1, 9), jnp.float32, -bound2, bound2)
    return w1, b1, w2, b2


if __name__ == "__main__":
    key = jax.random.PRNGKey(0)
    kx1, kx2, kp = jax.random.split(key, 3)
    w1, b1, w2, b2 = init_params(kp)

    # --- Case 1: tiny batch, single tile, f32 end-to-end (tight check). ----
    # NOTE: for production single-board inference this small, plain jnp would
    # beat the kernel (launch overhead >> 2.3 KFLOP); kept here for the demo.
    B1 = 2
    x1 = jax.random.randint(kx1, (B1, 9), -1, 2).astype(jnp.float32)
    fwd_f32 = jax.jit(functools.partial(tictactoe_forward, block_b=128))
    out1 = jax.block_until_ready(fwd_f32(x1, w1, b1, w2, b2))
    ref1 = jnp.maximum(x1 @ w1 + b1, 0.0) @ w2 + b2
    assert out1.shape == (B1, 9)
    assert jnp.allclose(out1, ref1, atol=1e-5, rtol=1e-5)

    # --- Case 2: ragged multi-tile batch, bf16 streaming (loose check). ----
    B2 = 20                       # not a multiple of the 8-row demo tile
    x2 = jax.random.randint(kx2, (B2, 9), -1, 2).astype(jnp.float32)
    fwd_bf16 = jax.jit(functools.partial(tictactoe_forward, block_b=8,
                                         storage_dtype=jnp.bfloat16))
    out2 = jax.block_until_ready(fwd_bf16(x2, w1, b1, w2, b2))
    ref2 = jnp.maximum(x2 @ w1 + b1, 0.0) @ w2 + b2
    assert out2.shape == (B2, 9)
    assert jnp.allclose(out2, ref2, atol=2.5e-1, rtol=5e-2)

    print("KERNEL_OK")
</pallas_src>

<mosaic_0001>
module attributes {stable_mosaic.version = 11 : i64} {
  func.func @tictactoe_mlp_kernel(%arg0: i32, %arg1: memref<8x9xf32, #tpu.memory_space<vmem>>, %arg2: memref<9x64xf32, #tpu.memory_space<vmem>>, %arg3: memref<1x64xf32, #tpu.memory_space<vmem>>, %arg4: memref<64x9xf32, #tpu.memory_space<vmem>>, %arg5: memref<1x9xf32, #tpu.memory_space<vmem>>, %arg6: memref<8x9xf32, #tpu.memory_space<vmem>>) attributes {dimension_semantics = [#tpu.dimension_semantics<parallel>], iteration_bounds = array<i64: 1>, scalar_prefetch = 0 : i64, scratch_operands = 0 : i64, tpu.core_type = #tpu.core_type<tc>, window_params = [{transform_indices = @transform_0, window_bounds = array<i64: 8, 9>}, {pipeline_mode = #tpu.pipeline_mode<synchronous>, transform_indices = @transform_1, window_bounds = array<i64: 9, 64>}, {pipeline_mode = #tpu.pipeline_mode<synchronous>, transform_indices = @transform_2, window_bounds = array<i64: 1, 64>}, {pipeline_mode = #tpu.pipeline_mode<synchronous>, transform_indices = @transform_3, window_bounds = array<i64: 64, 9>}, {pipeline_mode = #tpu.pipeline_mode<synchronous>, transform_indices = @transform_4, window_bounds = array<i64: 1, 9>}, {transform_indices = @transform_5, window_bounds = array<i64: 8, 9>}]} {
    %c0 = arith.constant 0 : index
    %c0_0 = arith.constant 0 : index
    %0 = vector.load %arg1[%c0, %c0_0] : memref<8x9xf32, #tpu.memory_space<vmem>>, vector<8x9xf32>
    %c0_1 = arith.constant 0 : index
    %c0_2 = arith.constant 0 : index
    %1 = vector.load %arg2[%c0_1, %c0_2] : memref<9x64xf32, #tpu.memory_space<vmem>>, vector<9x64xf32>
    %cst = arith.constant dense<0.000000e+00> : vector<8x64xf32>
    %2 = tpu.matmul %0, %1, %cst {dimension_numbers = #tpu.dot_dimension_numbers<[1], [0], [0], [1], [0, 0, 1, 1], [], []>} : vector<8x9xf32>, vector<9x64xf32>, vector<8x64xf32> -> vector<8x64xf32>
    %c0_3 = arith.constant 0 : index
    %c0_4 = arith.constant 0 : index
    %3 = vector.load %arg3[%c0_3, %c0_4] : memref<1x64xf32, #tpu.memory_space<vmem>>, vector<1x64xf32>
    %4 = vector.broadcast %3 : vector<1x64xf32> to vector<8x64xf32>
    %5 = arith.addf %2, %4 : vector<8x64xf32>
    %cst_5 = arith.constant 0.000000e+00 : f32
    %6 = vector.broadcast %cst_5 : f32 to vector<8x64xf32>
    %7 = arith.maximumf %5, %6 : vector<8x64xf32>
    %c0_6 = arith.constant 0 : index
    %c0_7 = arith.constant 0 : index
    %8 = vector.load %arg4[%c0_6, %c0_7] : memref<64x9xf32, #tpu.memory_space<vmem>>, vector<64x9xf32>
    %cst_8 = arith.constant dense<0.000000e+00> : vector<8x9xf32>
    %9 = tpu.matmul %7, %8, %cst_8 {dimension_numbers = #tpu.dot_dimension_numbers<[1], [0], [0], [1], [0, 0, 1, 1], [], []>} : vector<8x64xf32>, vector<64x9xf32>, vector<8x9xf32> -> vector<8x9xf32>
    %c0_9 = arith.constant 0 : index
    %c0_10 = arith.constant 0 : index
    %10 = vector.load %arg5[%c0_9, %c0_10] : memref<1x9xf32, #tpu.memory_space<vmem>>, vector<1x9xf32>
    %11 = vector.broadcast %10 : vector<1x9xf32> to vector<8x9xf32>
    %12 = arith.addf %9, %11 : vector<8x9xf32>
    %c0_11 = arith.constant 0 : index
    %c0_12 = arith.constant 0 : index
    %13 = vector.load %arg6[%c0_11, %c0_12] : memref<8x9xf32, #tpu.memory_space<vmem>>, vector<8x9xf32>
    tpu.vector_store %arg6[%c0_11, %c0_12], %12 {strides = array<i32>} : memref<8x9xf32, #tpu.memory_space<vmem>>, vector<8x9xf32>,
    return
  }
  func.func @transform_0(%arg0: i32) -> (i32, i32) {
    %c0_i32 = arith.constant 0 : i32
    %c0_i32_0 = arith.constant 0 : i32
    return %arg0, %c0_i32 : i32, i32
  }
  func.func @transform_1(%arg0: i32) -> (i32, i32) {
    %c0_i32 = arith.constant 0 : i32
    %c0_i32_0 = arith.constant 0 : i32
    %c0_i32_1 = arith.constant 0 : i32
    return %c0_i32, %c0_i32_0 : i32, i32
  }
  func.func @transform_2(%arg0: i32) -> (i32, i32) {
    %c0_i32 = arith.constant 0 : i32
    %c0_i32_0 = arith.constant 0 : i32
    %c0_i32_1 = arith.constant 0 : i32
    return %c0_i32, %c0_i32_0 : i32, i32
  }
  func.func @transform_3(%arg0: i32) -> (i32, i32) {
    %c0_i32 = arith.constant 0 : i32
    %c0_i32_0 = arith.constant 0 : i32
    %c0_i32_1 = arith.constant 0 : i32
    return %c0_i32, %c0_i32_0 : i32, i32
  }
  func.func @transform_4(%arg0: i32) -> (i32, i32) {
    %c0_i32 = arith.constant 0 : i32
    %c0_i32_0 = arith.constant 0 : i32
    %c0_i32_1 = arith.constant 0 : i32
    return %c0_i32, %c0_i32_0 : i32, i32
  }
  func.func @transform_5(%arg0: i32) -> (i32, i32) {
    %c0_i32 = arith.constant 0 : i32
    %c0_i32_0 = arith.constant 0 : i32
    return %arg0, %c0_i32 : i32, i32
  }
}

</mosaic_0001>

<llo_original>
// kernel: tictactoe_forward.1
$region0: #{tictactoe_forward.1}
  #allocation0 [shape = 'u32[]', space=smem, size = 0x4, offset = 0x4, fixed_abs, tag = 'smem constant byte address 0x4 - core index']
  #allocation1 [shape = 'u32[72,128]{1,0:T(1,128)}', space=vmem, size = 0x9000, scoped, tag = 'internal scratch']
  %s0 = inlined_call_operand.vmem [shape: f32[8,9], index: 0, kind: input, shape index: {}]
  %s1 = inlined_call_operand.vmem [shape: f32[9,64], index: 1, kind: input, shape index: {}]
  %s2 = inlined_call_operand.vmem [shape: f32[1,64], index: 2, kind: input, shape index: {}]
  %s3 = inlined_call_operand.vmem [shape: f32[64,9], index: 3, kind: input, shape index: {}]
  %s4 = inlined_call_operand.vmem [shape: f32[1,9], index: 4, kind: input, shape index: {}]
  %s5 = inlined_call_operand.vmem [shape: f32[8,9], index: 5, kind: output, shape index: {}]
  %s6 = sld [smem:[#allocation0]]
  $region30: #{tictactoe_forward.1} parent=0
    _
  %s8 = ssub.s32 1, %s6
  %s9 = scalar_select 0, %s8, %s6
  // Predicated region
  $region2: #{tictactoe_forward.1} parent=0 // pred_check
    _
  $region3: #{tictactoe_forward.1} parent=0 // pred_check_branch
    %11 = sbr.rel (0) target = $region5
  $region4: #{tictactoe_forward.1} parent=0 // pred_region
    _
  $region5: #{tictactoe_forward.1} parent=0 // pred_fallthru
    _
  // Predicated region
  $region6: #{tictactoe_forward.1} parent=0 // pred_check
    _
  $region7: #{tictactoe_forward.1} parent=0 // pred_check_branch
    %13 = sbr.rel (0) target = $region9
  $region8: #{tictactoe_forward.1} parent=0 // pred_region
    _
  $region9: #{tictactoe_forward.1} parent=0 // pred_fallthru
    _
  // Predicated region
  $region10: #{tictactoe_forward.1} parent=0 // pred_check
    _
  $region11: #{tictactoe_forward.1} parent=0 // pred_check_branch
    %15 = sbr.rel (0) target = $region13
  $region12: #{tictactoe_forward.1} parent=0 // pred_region
    _
  $region13: #{tictactoe_forward.1} parent=0 // pred_fallthru
    _
  // Predicated region
  $region14: #{tictactoe_forward.1} parent=0 // pred_check
    _
  $region15: #{tictactoe_forward.1} parent=0 // pred_check_branch
    %17 = sbr.rel (0) target = $region17
  $region16: #{tictactoe_forward.1} parent=0 // pred_region
    _
  $region17: #{tictactoe_forward.1} parent=0 // pred_fallthru
    _
  // Predicated region
  $region18: #{tictactoe_forward.1} parent=0 // pred_check
    _
  $region19: #{tictactoe_forward.1} parent=0 // pred_check_branch
    %19 = sbr.rel (0) target = $region21
  $region20: #{tictactoe_forward.1} parent=0 // pred_region
    _
  $region21: #{tictactoe_forward.1} parent=0 // pred_fallthru
    _
  %v20 = vld [vmem:[%s0] sm:$0xff]
  %v21 = vld [vmem:[%s1] sm:$0xff]
  %v22 = vld [vmem:[%s1 + $0x8] sm:$0x1]
  %v23 = vld [vmem:[%s2] sm:$0x1]
  %v25 = vperm.slane %v23, 0
  %vm27 = vcmask 72704
  %v29 = vsel %vm27, %v20, 0
  %vm31 = vcmask 1040384
  %v33 = vsel %vm31, %v22, 0
  %35 = vmatpush.msra.mxu0 0.0
  %36 = vmatpush.msra.mxu0 0.0
  %37 = vmatpush.msra.mxu0 0.0
  %38 = vmatpush.msra.mxu0 0.0
  %39 = vmatpush.msra.mxu0 0.0
  %40 = vmatpush.msra.mxu0 0.0
  %41 = vmatpush.msra.mxu0 0.0
  %42 = vmatpush.msra.mxu0 0.0
  %43 = vmatpush.msra.mxu0 0.0
  %44 = vmatpush.msra.mxu0 0.0
  %45 = vmatpush.msra.mxu0 0.0
  %46 = vmatpush.msra.mxu0 0.0
  %47 = vmatpush.msra.mxu0 0.0
  %48 = vmatpush.msra.mxu0 0.0
  %49 = vmatpush.msra.mxu0 %v33
  %50 = vmatpush.msra.mxu0 %v21
  %51 = vmatmul.f32.gmra.mxu0 %v29
  %v52 = vpop.f32.mrf.mxu0
  %v53 = vadd.f32 %v25, %v52
  %54 = vdwg.mxu0
  %v55 = vmax.f32 %v53, 0.0
  %v56 = vld [vmem:[%s3] sm:$0xff]
  %v57 = vld [vmem:[%s3 + $0x8] sm:$0xff]
  %v58 = vld [vmem:[%s3 + $0x10] sm:$0xff]
  %v59 = vld [vmem:[%s3 + $0x18] sm:$0xff]
  %v60 = vld [vmem:[%s3 + $0x20] sm:$0xff]
  %v61 = vld [vmem:[%s3 + $0x28] sm:$0xff]
  %v62 = vld [vmem:[%s3 + $0x30] sm:$0xff]
  %v63 = vld [vmem:[%s3 + $0x38] sm:$0xff]
  %v64 = vld [vmem:[%s4] sm:$0x1]
  %v66 = vperm.slane %v64, 0
  %vm68 = vcmask 523264
  %v70 = vsel %vm68, %v55, 0
  %72 = vmatpush.msra.mxu0 0.0
  %73 = vmatpush.msra.mxu0 0.0
  %74 = vmatpush.msra.mxu0 0.0
  %75 = vmatpush.msra.mxu0 0.0
  %76 = vmatpush.msra.mxu0 0.0
  %77 = vmatpush.msra.mxu0 0.0
  %78 = vmatpush.msra.mxu0 0.0
  %79 = vmatpush.msra.mxu0 0.0
  %80 = vmatpush.msra.mxu0 %v63
  %81 = vmatpush.msra.mxu0 %v62
  %82 = vmatpush.msra.mxu0 %v61
  %83 = vmatpush.msra.mxu0 %v60
  %84 = vmatpush.msra.mxu0 %v59
  %85 = vmatpush.msra.mxu0 %v58
  %86 = vmatpush.msra.mxu0 %v57
  %87 = vmatpush.msra.mxu0 %v56
  %88 = vmatmul.f32.gmra.mxu0 %v70
  %v89 = vpop.f32.mrf.mxu0
  %v90 = vadd.f32 %v66, %v89
  %91 = vdwg.mxu0
  %92 = vst.msk [vmem:[%s5] sm:$0xff] %vm27, %v90
  // Predicated region
  $region22: #{tictactoe_forward.1} parent=0 // pred_check
    _
  $region23: #{tictactoe_forward.1} parent=0 // pred_check_branch
    %94 = sbr.rel (0) target = $region25
  $region24: #{tictactoe_forward.1} parent=0 // pred_region
    _
  $region25: #{tictactoe_forward.1} parent=0 // pred_fallthru
    _
  // Predicated region
  $region26: #{tictactoe_forward.1} parent=0 // pred_check
    _
  $region27: #{tictactoe_forward.1} parent=0 // pred_check_branch
    %96 = sbr.rel (0) target = $region29
  $region28: #{tictactoe_forward.1} parent=0 // pred_region
    _
  $region29: #{tictactoe_forward.1} parent=0 // pred_fallthru
    _

</llo_original>
